<compile_context>
chip_gen: v6e
topology: v6e:2x2x1
jax: 0.10.0
libtpu: 0.0.40
codegen_flags: <defaults>
</compile_context>

<pallas_src>
import numpy as np
import jax
import jax.numpy as jnp
from jax.experimental import pallas as pl
from jax.experimental.pallas import tpu as pltpu


_VMEM_LIMIT = 48 * 1024 * 1024  # above all default scoped limits, below v7x physical


# ----------------------------------------------------------------------------
# Tiling choice: TH image rows per spatial tile (TH divides H).
# ----------------------------------------------------------------------------
def _pick_tile_rows(H, W, target=512, cap=2048):
    for d in range(1, H):
        if H % d:
            continue
        rows = d * W
        if d >= 2 and rows % 8 == 0 and target <= rows <= cap:
            return d
    return H  # fall back to full height (single row-tile)


# ----------------------------------------------------------------------------
# In-kernel helpers (traced Python)
# ----------------------------------------------------------------------------
def _fill_norm_slab(src_ref, nbuf, sc, sh, r, R, start, TILE, W1, C):
    """Fill nbuf (TILE + 2*W1 rows, C) with SiLU(norm(src)) for flattened rows
    [start - W1, start + TILE + W1); rows outside the image are zero (this is
    the conv's zero padding, folded into the kernel)."""

    def norm_silu(v):
        y = v * sc + sh
        return y * jax.nn.sigmoid(y)

    @pl.when(r > 0)
    def _():
        nbuf[0:W1, :] = norm_silu(src_ref[0, pl.ds(start - W1, W1), :])

    @pl.when(r == 0)
    def _():
        nbuf[0:W1, :] = jnp.zeros((W1, C), jnp.float32)

    nbuf[W1:W1 + TILE, :] = norm_silu(src_ref[0, pl.ds(start, TILE), :])

    @pl.when(r < R - 1)
    def _():
        nbuf[W1 + TILE:, :] = norm_silu(src_ref[0, pl.ds(start + TILE, W1), :])

    @pl.when(r == R - 1)
    def _():
        nbuf[W1 + TILE:, :] = jnp.zeros((W1, C), jnp.float32)


def _conv3x3_accumulate(nbuf, w_ref, acc, TILE, W, W1):
    """acc += 3x3 conv of the slab in nbuf: 9 contiguous shifted slices, each a
    (TILE, Cin) x (Cin, Cout) bf16 MXU matmul with fp32 accumulation; column
    wrap at x==0 / x==W-1 is masked out."""
    iota = jax.lax.broadcasted_iota(jnp.int32, (TILE, 1), 0)
    if W & (W - 1) == 0:
        col = jnp.bitwise_and(iota, W - 1)
    else:
        col = iota % W
    not_left = col != 0
    not_right = col != (W - 1)

    for ky in range(3):
        dy = ky - 1
        part = None
        for kx in range(3):
            dx = kx - 1
            off = W1 + dy * W + dx                      # static slab offset
            slab = nbuf[off:off + TILE, :]
            if dx == -1:
                slab = jnp.where(not_left, slab, 0.0)
            elif dx == 1:
                slab = jnp.where(not_right, slab, 0.0)
            d = jnp.dot(slab.astype(jnp.bfloat16), w_ref[ky, kx],
                        preferred_element_type=jnp.float32)
            part = d if part is None else part + d
        acc[...] += part


# ----------------------------------------------------------------------------
# Kernel 1: per-channel sums (GroupNorm statistics), spatially tiled
# ----------------------------------------------------------------------------
def _stats_kernel(x_ref, s1_ref, s2_ref):
    xs = x_ref[0]                                         # (TILE, C) fp32
    s1_ref[0, 0] = jnp.sum(xs, axis=0, keepdims=True)
    s2_ref[0, 0] = jnp.sum(xs * xs, axis=0, keepdims=True)


def channel_stats(x_flat, tile):
    B, HW, C = x_flat.shape
    R = HW // tile
    return pl.pallas_call(
        _stats_kernel,
        out_shape=(jax.ShapeDtypeStruct((B, R, 1, C), jnp.float32),
                   jax.ShapeDtypeStruct((B, R, 1, C), jnp.float32)),
        grid_spec=pltpu.PrefetchScalarGridSpec(
            num_scalar_prefetch=0,
            grid=(B, R),
            in_specs=[pl.BlockSpec((1, tile, C), lambda b, r: (b, r, 0))],
            out_specs=(pl.BlockSpec((1, 1, 1, C), lambda b, r: (b, r, 0, 0)),
                       pl.BlockSpec((1, 1, 1, C), lambda b, r: (b, r, 0, 0))),
        ),
        compiler_params=pltpu.CompilerParams(
            dimension_semantics=("parallel", "parallel"),
            vmem_limit_bytes=_VMEM_LIMIT),
    )(x_flat)


# ----------------------------------------------------------------------------
# Glue: per-channel sums -> per-(batch, channel) GroupNorm affine (scale, shift)
# ----------------------------------------------------------------------------
def gn_affine(s1, s2, gamma, beta, num_groups, hw, eps=1e-6):
    # TODO(synk): variance uses E[x^2]-E[x]^2 in fp32 (single-pass); a two-pass
    # formulation would be safer for activations with very large means.
    B = s1.shape[0]
    C = s1.shape[-1]
    G = num_groups
    cg = C // G
    S1 = jnp.sum(s1, axis=(1, 2))                         # (B, C)
    S2 = jnp.sum(s2, axis=(1, 2))
    n = float(hw * cg)
    gm = jnp.sum(S1.reshape(B, G, cg), axis=-1) / n       # group mean
    g2 = jnp.sum(S2.reshape(B, G, cg), axis=-1) / n       # group E[x^2]
    var = g2 - gm * gm
    inv = jax.lax.rsqrt(var + eps)
    mean_c = jnp.repeat(gm, cg, axis=1)                   # (B, C)
    inv_c = jnp.repeat(inv, cg, axis=1)
    scale = inv_c * gamma.reshape(1, C)
    shift = beta.reshape(1, C) - mean_c * scale
    return (scale.reshape(B, 1, C).astype(jnp.float32),
            shift.reshape(B, 1, C).astype(jnp.float32))


# ----------------------------------------------------------------------------
# Kernel 2: fused  act(GN_0(x)) -> Conv_0 (+ bias + temb proj),
#           also emits per-tile channel sums of h for GroupNorm_1.
# ----------------------------------------------------------------------------
def _make_conv0_kernel(W, TH, Cin, Cout):
    TILE = TH * W
    W1 = W + 1
    NROWS = TILE + 2 * W1
    ALIGNED = (TILE % 8 == 0)

    def kernel(x_ref, sc_ref, sh_ref, w_ref, add_ref,
               h_ref, s1_ref, s2_ref, nbuf, acc):
        r = pl.program_id(1)
        R = pl.num_programs(1)
        start = r * TILE
        if ALIGNED:
            start = pl.multiple_of(start, 8)

        _fill_norm_slab(x_ref, nbuf, sc_ref[0], sh_ref[0],
                        r, R, start, TILE, W1, Cin)

        acc[...] = jnp.broadcast_to(add_ref[0], (TILE, Cout))   # bias + temb proj
        _conv3x3_accumulate(nbuf, w_ref, acc, TILE, W, W1)

        h = acc[...]
        h_ref[0] = h
        # fused GroupNorm_1 statistics (saves one full HBM pass over h)
        s1_ref[0, 0] = jnp.sum(h, axis=0, keepdims=True)
        s2_ref[0, 0] = jnp.sum(h * h, axis=0, keepdims=True)

    return kernel, TILE, NROWS


def gn_silu_conv3x3_temb(x_flat, scale, shift, w_bf16, add, H, W, TH):
    B, HW, Cin = x_flat.shape
    Cout = w_bf16.shape[-1]
    kernel, TILE, NROWS = _make_conv0_kernel(W, TH, Cin, Cout)
    R = HW // TILE
    return pl.pallas_call(
        kernel,
        out_shape=(jax.ShapeDtypeStruct((B, HW, Cout), jnp.float32),
                   jax.ShapeDtypeStruct((B, R, 1, Cout), jnp.float32),
                   jax.ShapeDtypeStruct((B, R, 1, Cout), jnp.float32)),
        grid_spec=pltpu.PrefetchScalarGridSpec(
            num_scalar_prefetch=0,
            grid=(B, R),
            in_specs=[
                # full image per batch, block index independent of r -> reused
                pl.BlockSpec((1, HW, Cin), lambda b, r: (b, 0, 0)),
                pl.BlockSpec((1, 1, Cin), lambda b, r: (b, 0, 0)),
                pl.BlockSpec((1, 1, Cin), lambda b, r: (b, 0, 0)),
                pl.BlockSpec((3, 3, Cin, Cout), lambda b, r: (0, 0, 0, 0)),
                pl.BlockSpec((1, 1, Cout), lambda b, r: (b, 0, 0)),
            ],
            out_specs=(
                pl.BlockSpec((1, TILE, Cout), lambda b, r: (b, r, 0)),
                pl.BlockSpec((1, 1, 1, Cout), lambda b, r: (b, r, 0, 0)),
                pl.BlockSpec((1, 1, 1, Cout), lambda b, r: (b, r, 0, 0)),
            ),
            scratch_shapes=[pltpu.VMEM((NROWS, Cin), jnp.float32),
                            pltpu.VMEM((TILE, Cout), jnp.float32)],
        ),
        compiler_params=pltpu.CompilerParams(
            dimension_semantics=("parallel", "parallel"),
            vmem_limit_bytes=_VMEM_LIMIT),
    )(x_flat, scale, shift, w_bf16, add)


# ----------------------------------------------------------------------------
# Kernel 3: fused  act(GN_1(h)) -> Conv_1  +  Conv_2(x) skip  -> (x+h)/sqrt(2)
# ----------------------------------------------------------------------------
def _make_conv1_kernel(W, TH, Cmid, Cout, out_scale):
    TILE = TH * W
    W1 = W + 1
    NROWS = TILE + 2 * W1
    ALIGNED = (TILE % 8 == 0)

    def kernel(h_ref, sc_ref, sh_ref, w1_ref, b1_ref, x_ref, w2_ref, b2_ref,
               o_ref, nbuf, acc):
        r = pl.program_id(1)
        R = pl.num_programs(1)
        start = r * TILE
        if ALIGNED:
            start = pl.multiple_of(start, 8)

        _fill_norm_slab(h_ref, nbuf, sc_ref[0], sh_ref[0],
                        r, R, start, TILE, W1, Cmid)

        acc[...] = jnp.broadcast_to(b1_ref[...], (TILE, Cout))
        _conv3x3_accumulate(nbuf, w1_ref, acc, TILE, W, W1)

        # 1x1 skip conv on raw x: bf16 MXU operands, fp32 accumulation
        skip = jnp.dot(x_ref[0].astype(jnp.bfloat16), w2_ref[...],
                       preferred_element_type=jnp.float32) + b2_ref[...]
        o_ref[0] = (acc[...] + skip) * out_scale

    return kernel, TILE, NROWS


def gn_silu_conv3x3_skip(h_flat, scale, shift, w1_bf16, b1, x_flat, w2_bf16, b2,
                         H, W, TH, skip_rescale=True):
    B, HW, Cmid = h_flat.shape
    Cout = w1_bf16.shape[-1]
    Cin = x_flat.shape[-1]
    out_scale = float(1.0 / np.sqrt(2.0)) if skip_rescale else 1.0
    kernel, TILE, NROWS = _make_conv1_kernel(W, TH, Cmid, Cout, out_scale)
    R = HW // TILE
    return pl.pallas_call(
        kernel,
        out_shape=jax.ShapeDtypeStruct((B, HW, Cout), jnp.float32),
        grid_spec=pltpu.PrefetchScalarGridSpec(
            num_scalar_prefetch=0,
            grid=(B, R),
            in_specs=[
                pl.BlockSpec((1, HW, Cmid), lambda b, r: (b, 0, 0)),
                pl.BlockSpec((1, 1, Cmid), lambda b, r: (b, 0, 0)),
                pl.BlockSpec((1, 1, Cmid), lambda b, r: (b, 0, 0)),
                pl.BlockSpec((3, 3, Cmid, Cout), lambda b, r: (0, 0, 0, 0)),
                pl.BlockSpec((1, Cout), lambda b, r: (0, 0)),
                pl.BlockSpec((1, TILE, Cin), lambda b, r: (b, r, 0)),
                pl.BlockSpec((Cin, Cout), lambda b, r: (0, 0)),
                pl.BlockSpec((1, Cout), lambda b, r: (0, 0)),
            ],
            out_specs=pl.BlockSpec((1, TILE, Cout), lambda b, r: (b, r, 0)),
            scratch_shapes=[pltpu.VMEM((NROWS, Cmid), jnp.float32),
                            pltpu.VMEM((TILE, Cout), jnp.float32)],
        ),
        compiler_params=pltpu.CompilerParams(
            dimension_semantics=("parallel", "parallel"),
            vmem_limit_bytes=_VMEM_LIMIT),
    )(h_flat, scale, shift, w1_bf16, b1, x_flat, w2_bf16, b2)


# ----------------------------------------------------------------------------
# Full forward (thin plain-JAX glue around the three pallas_calls)
# ----------------------------------------------------------------------------
def resnet_block_biggan_pp(x_nchw, temb, params, skip_rescale=True):
    # TODO(synk): up/down (naive & FIR) resampling paths not implemented; this
    # covers up=down=False only.
    B, Cin, H, W = x_nchw.shape
    Cout = params["conv0_w"].shape[-1]
    G0 = max(1, min(Cin // 4, 32))
    G1 = max(1, min(Cout // 4, 32))
    HW = H * W
    TH = _pick_tile_rows(H, W)

    x = jnp.transpose(x_nchw, (0, 2, 3, 1)).astype(jnp.float32).reshape(B, HW, Cin)

    # GroupNorm_0 statistics (Pallas tiled reduction) -> per-channel affine
    s1, s2 = channel_stats(x, TH * W)
    scale0, shift0 = gn_affine(s1, s2, params["gn0_gamma"], params["gn0_beta"], G0, HW)

    # Dense_0(act(temb)) + Conv_0 bias: tiny (B,Td)@(Td,Cout), plain-JAX glue
    t = temb.astype(jnp.float32)
    tproj = (t * jax.nn.sigmoid(t)) @ params["dense_w"] + params["dense_b"]
    add0 = (tproj + params["conv0_b"]).reshape(B, 1, Cout).astype(jnp.float32)

    # fused: act(GN_0(x)) -> Conv_0 -> (+ temb proj); also emits GN_1 sums
    w0 = params["conv0_w"].astype(jnp.bfloat16)
    h1, hs1, hs2 = gn_silu_conv3x3_temb(x, scale0, shift0, w0, add0, H, W, TH)

    scale1, shift1 = gn_affine(hs1, hs2, params["gn1_gamma"], params["gn1_beta"], G1, HW)

    # TODO(synk): Dropout_0 modeled as inference-mode identity (no RNG mask).
    # fused: act(GN_1(h)) -> Conv_1 ; Conv_2(x) skip ; (x + h) / sqrt(2)
    w1 = params["conv1_w"].astype(jnp.bfloat16)
    w2 = params["conv2_w"].astype(jnp.bfloat16)
    out_flat = gn_silu_conv3x3_skip(h1, scale1, shift1, w1, params["conv1_b"],
                                    x, w2, params["conv2_b"],
                                    H, W, TH, skip_rescale)
    out = out_flat.reshape(B, H, W, Cout)
    return jnp.transpose(out, (0, 3, 1, 2))                # back to NCHW


# ----------------------------------------------------------------------------
# Deterministic synthetic parameters (shapes follow the module __init__).
# Note: conv1 would use init_scale=0.0 (~1e-10) in the original; we use a
# nonzero deterministic init so the numerical check is meaningful.
# ----------------------------------------------------------------------------
def init_params(key, in_ch, out_ch, temb_dim):
    ks = jax.random.split(key, 10)
    f32 = jnp.float32
    return {
        "gn0_gamma": (1.0 + 0.1 * jax.random.normal(ks[0], (1, in_ch))).astype(f32),
        "gn0_beta": (0.1 * jax.random.normal(ks[1], (1, in_ch))).astype(f32),
        "conv0_w": (jax.random.normal(ks[2], (3, 3, in_ch, out_ch)) / np.sqrt(9 * in_ch)).astype(f32),
        "conv0_b": (0.1 * jax.random.normal(ks[3], (1, out_ch))).astype(f32),
        "dense_w": (jax.random.normal(ks[4], (temb_dim, out_ch)) / np.sqrt(temb_dim)).astype(f32),
        "dense_b": jnp.zeros((1, out_ch), f32),
        "gn1_gamma": (1.0 + 0.1 * jax.random.normal(ks[5], (1, out_ch))).astype(f32),
        "gn1_beta": (0.1 * jax.random.normal(ks[6], (1, out_ch))).astype(f32),
        "conv1_w": (jax.random.normal(ks[7], (3, 3, out_ch, out_ch)) / np.sqrt(9 * out_ch)).astype(f32),
        "conv1_b": jnp.zeros((1, out_ch), f32),
        "conv2_w": (jax.random.normal(ks[8], (in_ch, out_ch)) / np.sqrt(in_ch)).astype(f32),
        "conv2_b": (0.1 * jax.random.normal(ks[9], (1, out_ch))).astype(f32),
    }


# ----------------------------------------------------------------------------
# Pure-JAX fp32 reference (NHWC) for the correctness check
# ----------------------------------------------------------------------------
def ref_forward_nhwc(x, temb, p, G0, G1):
    silu = lambda v: v * jax.nn.sigmoid(v)

    def gn(v, G, gamma, beta, eps=1e-6):
        B, H, W, C = v.shape
        vg = v.reshape(B, H, W, G, C // G)
        mean = vg.mean(axis=(1, 2, 4), keepdims=True)
        var = ((vg - mean) ** 2).mean(axis=(1, 2, 4), keepdims=True)
        vn = (vg - mean) / jnp.sqrt(var + eps)
        return vn.reshape(B, H, W, C) * gamma.reshape(1, 1, 1, C) + beta.reshape(1, 1, 1, C)

    def conv3(v, w, b):
        return jax.lax.conv_general_dilated(
            v, w, (1, 1), "SAME",
            dimension_numbers=("NHWC", "HWIO", "NHWC")) + b.reshape(1, 1, 1, -1)

    h = silu(gn(x, G0, p["gn0_gamma"], p["gn0_beta"]))
    h = conv3(h, p["conv0_w"], p["conv0_b"])
    h = h + (silu(temb) @ p["dense_w"] + p["dense_b"])[:, None, None, :]
    h = silu(gn(h, G1, p["gn1_gamma"], p["gn1_beta"]))
    h = conv3(h, p["conv1_w"], p["conv1_b"])
    xs = jnp.einsum("bhwc,cd->bhwd", x, p["conv2_w"]) + p["conv2_b"].reshape(1, 1, 1, -1)
    return (xs + h) / np.sqrt(2.0)


if __name__ == "__main__":
    B, in_ch, out_ch, H, W, temb_dim = 2, 4, 8, 16, 16, 32
    key = jax.random.PRNGKey(0)
    kx, kt, kp = jax.random.split(key, 3)
    x_nchw = jax.random.normal(kx, (B, in_ch, H, W), jnp.float32)
    temb = jax.random.normal(kt, (B, temb_dim), jnp.float32)
    params = init_params(kp, in_ch, out_ch, temb_dim)

    out = resnet_block_biggan_pp(x_nchw, temb, params)
    out = jax.block_until_ready(out)

    # correctness check vs. fp32 plain-JAX reference (kernel uses bf16 MXU
    # operands for the convs -> tolerance loosened accordingly)
    x_nhwc = jnp.transpose(x_nchw, (0, 2, 3, 1))
    ref = ref_forward_nhwc(x_nhwc, temb, params,
                           G0=max(1, min(in_ch // 4, 32)),
                           G1=max(1, min(out_ch // 4, 32)))
    ref_nchw = jnp.transpose(ref, (0, 3, 1, 2))
    np.testing.assert_allclose(np.asarray(out), np.asarray(ref_nchw),
                               rtol=2e-2, atol=2e-2)
    print("KERNEL_OK")
</pallas_src>

<mosaic_0001>
module attributes {stable_mosaic.version = 11 : i64} {
  func.func @_stats_kernel(%arg0: i32, %arg1: i32, %arg2: memref<1x256x4xf32, #tpu.memory_space<vmem>>, %arg3: memref<1x1x1x4xf32, #tpu.memory_space<vmem>>, %arg4: memref<1x1x1x4xf32, #tpu.memory_space<vmem>>) attributes {dimension_semantics = [#tpu.dimension_semantics<parallel>, #tpu.dimension_semantics<parallel>], iteration_bounds = array<i64: 2, 1>, scalar_prefetch = 0 : i64, scratch_operands = 0 : i64, tpu.core_type = #tpu.core_type<tc>, window_params = [{transform_indices = @transform_0, window_bounds = array<i64: 1, 256, 4>}, {transform_indices = @transform_1, window_bounds = array<i64: 1, 1, 1, 4>}, {transform_indices = @transform_2, window_bounds = array<i64: 1, 1, 1, 4>}]} {
    %c0 = arith.constant 0 : index
    %c0_0 = arith.constant 0 : index
    %c0_1 = arith.constant 0 : index
    %0 = vector.load %arg2[%c0, %c0_0, %c0_1] : memref<1x256x4xf32, #tpu.memory_space<vmem>>, vector<1x256x4xf32>
    %1 = vector.shape_cast %0 : vector<1x256x4xf32> to vector<256x4xf32>
    %cst = arith.constant dense<0.000000e+00> : vector<4xf32>
    %2 = vector.multi_reduction <add>, %1, %cst [0] : vector<256x4xf32> to vector<4xf32>
    %3 = vector.shape_cast %2 : vector<4xf32> to vector<1x4xf32>
    %c0_2 = arith.constant 0 : index
    %c0_3 = arith.constant 0 : index
    %c0_4 = arith.constant 0 : index
    %c0_5 = arith.constant 0 : index
    %4 = vector.load %arg3[%c0_2, %c0_3, %c0_4, %c0_5] : memref<1x1x1x4xf32, #tpu.memory_space<vmem>>, vector<1x1x1x4xf32>
    %5 = vector.shape_cast %4 : vector<1x1x1x4xf32> to vector<1x4xf32>
    %6 = vector.shape_cast %3 : vector<1x4xf32> to vector<1x1x1x4xf32>
    tpu.vector_store %arg3[%c0_2, %c0_3, %c0_4, %c0_5], %6 {strides = array<i32>} : memref<1x1x1x4xf32, #tpu.memory_space<vmem>>, vector<1x1x1x4xf32>,
    %7 = arith.mulf %1, %1 : vector<256x4xf32>
    %cst_6 = arith.constant dense<0.000000e+00> : vector<4xf32>
    %8 = vector.multi_reduction <add>, %7, %cst_6 [0] : vector<256x4xf32> to vector<4xf32>
    %9 = vector.shape_cast %8 : vector<4xf32> to vector<1x4xf32>
    %c0_7 = arith.constant 0 : index
    %c0_8 = arith.constant 0 : index
    %c0_9 = arith.constant 0 : index
    %c0_10 = arith.constant 0 : index
    %10 = vector.load %arg4[%c0_7, %c0_8, %c0_9, %c0_10] : memref<1x1x1x4xf32, #tpu.memory_space<vmem>>, vector<1x1x1x4xf32>
    %11 = vector.shape_cast %10 : vector<1x1x1x4xf32> to vector<1x4xf32>
    %12 = vector.shape_cast %9 : vector<1x4xf32> to vector<1x1x1x4xf32>
    tpu.vector_store %arg4[%c0_7, %c0_8, %c0_9, %c0_10], %12 {strides = array<i32>} : memref<1x1x1x4xf32, #tpu.memory_space<vmem>>, vector<1x1x1x4xf32>,
    return
  }
  func.func @transform_0(%arg0: i32, %arg1: i32) -> (i32, i32, i32) {
    %c0_i32 = arith.constant 0 : i32
    %c0_i32_0 = arith.constant 0 : i32
    return %arg0, %arg1, %c0_i32 : i32, i32, i32
  }
  func.func @transform_1(%arg0: i32, %arg1: i32) -> (i32, i32, i32, i32) {
    %c0_i32 = arith.constant 0 : i32
    %c0_i32_0 = arith.constant 0 : i32
    %c0_i32_1 = arith.constant 0 : i32
    return %arg0, %arg1, %c0_i32, %c0_i32_0 : i32, i32, i32, i32
  }
  func.func @transform_2(%arg0: i32, %arg1: i32) -> (i32, i32, i32, i32) {
    %c0_i32 = arith.constant 0 : i32
    %c0_i32_0 = arith.constant 0 : i32
    %c0_i32_1 = arith.constant 0 : i32
    return %arg0, %arg1, %c0_i32, %c0_i32_0 : i32, i32, i32, i32
  }
}

</mosaic_0001>

<llo_original>
// kernel: tpu_custom_call.1
$region0: #{tpu_custom_call.1}
  #allocation0 [shape = 'u32[]', space=smem, size = 0x4, offset = 0x4, fixed_abs, tag = 'smem constant byte address 0x4 - core index']
  #allocation1 [shape = 'u32[144,128]{1,0:T(1,128)}', space=vmem, size = 0x12000, scoped, tag = 'internal scratch']
  %s0 = inlined_call_operand.vmem [shape: f32[2,256,4], index: 0, kind: input, shape index: {}]
  %s1 = inlined_call_operand.hbm [shape: f32[2,1,1,4], index: 1, kind: output, shape index: {0}]
  %s2 = inlined_call_operand.hbm [shape: f32[2,1,1,4], index: 2, kind: output, shape index: {1}]
  %3 = xla_tuple %s1, %s2
  %s4 = sld [smem:[#allocation0]]
  $region45: #{tpu_custom_call.1} parent=0
    _
  %s6 = ssub.s32 1, %s4
  %s7 = scalar_select 0, %s6, %s4
  $region1: #{tpu_custom_call.1} parent=0
    #allocation2 [shape = 'u8[1024]{0}', space=vmem, size = 0x400, scoped, tag = 'output window, operand 0']
    #allocation3 [shape = 's32[2]{0}', space=sflag, size = 0x8, scoped, tag = 'scoped memory for tpu_custom_call.1']
    #allocation4 [shape = 'u8[1024]{0}', space=vmem, size = 0x400, scoped, tag = 'output window, operand 1']
    #allocation5 [shape = 's32[2]{0}', space=sflag, size = 0x8, scoped, tag = 'scoped memory for tpu_custom_call.1']
    %8 = vsyncpa [#allocation3], 0
    %s9 = scalar_lea.sflag [#allocation3], 1
    %10 = vsyncpa %s9, 0
    %11 = vsyncpa [#allocation5], 0
    %s12 = scalar_lea.sflag [#allocation5], 1
    %13 = vsyncpa %s12, 0
    loop: start=0, step=1, limit=4
    $region2: #{tpu_custom_call.1} parent=1 // loop_pre_header
      _
    $region3: #{tpu_custom_call.1} parent=1 // loop_header
      %s15 = sphi 0, %s19
      %p16 = scmp.ge.s32.totalorder %s15, 4
      %s22 = sphi 0, %s34
      %s23 = sphi 0, %s30
      %s24 = sphi 0, %s22
      %s25 = sphi 0, %s23
      %s26 = sphi 0, %s24
      %s27 = sphi 0, %s25
      %s39 = sphi 0, %s41
      %s42 = sphi 0, %s39
      %s43 = sphi 0, %s42
      %s59 = sphi 0, %s43
      %s67 = sphi 0, %s69
      %s70 = sphi 0, %s67
      %s71 = sphi 0, %s70
      %s87 = sphi 0, %s71
      %s95 = sphi 0, %s97
      %s98 = sphi 0, %s95
      %s99 = sphi 0, %s98
      %s115 = sphi 0, %s99
    $region4: #{tpu_custom_call.1} parent=1 // loop_header_branch
      %18 = sbr.rel (%p16) target = $region8
    $region5: #{tpu_custom_call.1} parent=1 // loop_body
      %s20 = ssub.s32 %s15, 1
      %s21 = ssub.s32 %s15, 2
      %s28 = sadd.s32 1, %s23
      %p29 = scmp.ge.s32.totalorder %s28, 1
      %s30 = scalar_select %p29, 0, %s28
      %s31 = sadd.s32 1, %s22
      %s32 = scalar_select %p29, %s31, %s22
      %p33 = scmp.ge.s32.totalorder %s32, 2
      %s34 = scalar_select %p33, 0, %s32
      %s35 = ssub.s32 %s22, %s34
      %s36 = ssub.s32 %s23, %s30
      %s37 = sor.u32 %s35, %s36
      %p38 = scmp.eq.s32.totalorder %s37, 0
      %s40 = sadd.s32 %s39, 1
      %s41 = scalar_select %p38, %s39, %s40
      %p44 = pneg %p38
      %p45 = scmp.eq.s32.totalorder %s15, 1
      %p46 = por %p44, %p45
      %p47 = scmp.ne.s32.totalorder %s39, %s42
      %p48 = scmp.eq.s32.totalorder %s15, 0
      %p49 = por %p47, %p48
      %p50 = scmp.ne.s32.totalorder %s39, %s42
      %p51 = scmp.eq.s32.totalorder %s20, 1
      %p52 = por %p50, %p51
      %p53 = scmp.ne.s32.totalorder %s42, %s43
      %p54 = scmp.eq.s32.totalorder %s20, 0
      %p55 = por %p53, %p54
      %p56 = scmp.ne.s32.totalorder %s42, %s43
      %p57 = scmp.eq.s32.totalorder %s21, 1
      %p58 = por %p56, %p57
      %p60 = scmp.ne.s32.totalorder %s43, %s59
      %p61 = scmp.eq.s32.totalorder %s21, 0
      %p62 = por %p60, %p61
      %s63 = ssub.s32 %s22, %s34
      %s64 = ssub.s32 %s23, %s30
      %s65 = sor.u32 %s63, %s64
      %p66 = scmp.eq.s32.totalorder %s65, 0
      %s68 = sadd.s32 %s67, 1
      %s69 = scalar_select %p66, %s67, %s68
      %p72 = pneg %p66
      %p73 = scmp.eq.s32.totalorder %s15, 1
      %p74 = por %p72, %p73
      %p75 = scmp.ne.s32.totalorder %s67, %s70
      %p76 = scmp.eq.s32.totalorder %s15, 0
      %p77 = por %p75, %p76
      %p78 = scmp.ne.s32.totalorder %s67, %s70
      %p79 = scmp.eq.s32.totalorder %s20, 1
      %p80 = por %p78, %p79
      %p81 = scmp.ne.s32.totalorder %s70, %s71
      %p82 = scmp.eq.s32.totalorder %s20, 0
      %p83 = por %p81, %p82
      %p84 = scmp.ne.s32.totalorder %s70, %s71
      %p85 = scmp.eq.s32.totalorder %s21, 1
      %p86 = por %p84, %p85
      %p88 = scmp.ne.s32.totalorder %s71, %s87
      %p89 = scmp.eq.s32.totalorder %s21, 0
      %p90 = por %p88, %p89
      %s91 = ssub.s32 %s22, %s34
      %s92 = ssub.s32 %s23, %s30
      %s93 = sor.u32 %s91, %s92
      %p94 = scmp.eq.s32.totalorder %s93, 0
      %s96 = sadd.s32 %s95, 1
      %s97 = scalar_select %p94, %s95, %s96
      %p100 = pneg %p94
      %p101 = scmp.eq.s32.totalorder %s15, 1
      %p102 = por %p100, %p101
      %p103 = scmp.ne.s32.totalorder %s95, %s98
      %p104 = scmp.eq.s32.totalorder %s15, 0
      %p105 = por %p103, %p104
      %p106 = scmp.ne.s32.totalorder %s95, %s98
      %p107 = scmp.eq.s32.totalorder %s20, 1
      %p108 = por %p106, %p107
      %p109 = scmp.ne.s32.totalorder %s98, %s99
      %p110 = scmp.eq.s32.totalorder %s20, 0
      %p111 = por %p109, %p110
      %p112 = scmp.ne.s32.totalorder %s98, %s99
      %p113 = scmp.eq.s32.totalorder %s21, 1
      %p114 = por %p112, %p113
      %p116 = scmp.ne.s32.totalorder %s99, %s115
      %p117 = scmp.eq.s32.totalorder %s21, 0
      %p118 = por %p116, %p117
      %p119 = scmp.le.s32.totalorder 1, %s15
      %p120 = scmp.lt.s32.totalorder %s15, 3
      %p121 = pnand %p119, %p120
      %p122 = pneg %p121
      // Predicated region
      $region9: #{tpu_custom_call.1} parent=5 // pred_check
        _
      $region10: #{tpu_custom_call.1} parent=5 // pred_check_branch
        %124 = sbr.rel (%p121) target = $region12
      $region11: #{tpu_custom_call.1} parent=5 // pred_region
        %s125 = ssub.s32 %s15, 1
      $region12: #{tpu_custom_call.1} parent=5 // pred_fallthru
        _
      %p126 = scmp.lt.s32.totalorder %s15, 2
      // Predicated region
      $region13: #{tpu_custom_call.1} parent=5 // pred_check
        %p127 = pneg %p126
      $region14: #{tpu_custom_call.1} parent=5 // pred_check_branch
        %129 = sbr.rel (%p127) target = $region16
      $region15: #{tpu_custom_call.1} parent=5 // pred_region
        // Predicated region
        $region17: #{tpu_custom_call.1} parent=15 // pred_check
          %p130 = pneg %p49
        $region18: #{tpu_custom_call.1} parent=15 // pred_check_branch
          %132 = sbr.rel (%p130) target = $region20
        $region19: #{tpu_custom_call.1} parent=15 // pred_region
          %s133 = smul.u32 32, %s23
          %p134 = scmp.lt.s32.totalorder %s22, 1
          %s135 = scalar_select %p134, %s22, 1
          %p136 = scmp.lt.s32.totalorder %s133, 31
          %s137 = scalar_select %p136, %s133, 31
          %s138 = smul.addr %s135, 32
          %s139 = sadd.s32 %s137, %s138
          %s140 = smul.addr %s139, 8
          %s141 = scalar_lea.vmem %s0, %s140
          %s142 = smul.u32 32, %s23
        $region20: #{tpu_custom_call.1} parent=15 // pred_fallthru
          _
      $region16: #{tpu_custom_call.1} parent=5 // pred_fallthru
        _
      %p143 = scmp.le.s32.totalorder 1, %s15
      %p144 = scmp.lt.s32.totalorder %s15, 3
      %p145 = pnand %p143, %p144
      %p146 = pneg %p145
      // Predicated region
      $region21: #{tpu_custom_call.1} parent=5 // pred_check
        _
      $region22: #{tpu_custom_call.1} parent=5 // pred_check_branch
        %148 = sbr.rel (%p145) target = $region24
      $region23: #{tpu_custom_call.1} parent=5 // pred_region
        %s149 = ssub.s32 %s15, 1
        %s150 = smul.u32 32, %s25
        %p151 = scmp.lt.s32.totalorder %s24, 1
        %s152 = scalar_select %p151, %s24, 1
        %p153 = scmp.lt.s32.totalorder %s150, 31
        %s154 = scalar_select %p153, %s150, 31
        %s155 = smul.addr %s152, 32
        %s156 = sadd.s32 %s154, %s155
        %s157 = smul.addr %s156, 8
        %s158 = scalar_lea.vmem %s0, %s157
        %p159 = pneg %p55
        %p160 = pneg %p52
        %p161 = pneg %p83
        %p162 = pneg %p80
        %s163 = sand.u32 %s70, 1
        %s164 = scalar_lea.sflag [#allocation3], %s163
        %s165 = sand.u32 %s70, 1
        %s166 = scalar_lea.vmem [#allocation2], %s165
        %p167 = pneg %p111
        %p168 = pneg %p108
        %s169 = sand.u32 %s98, 1
        %s170 = scalar_lea.sflag [#allocation5], %s169
        %s171 = sand.u32 %s98, 1
        %s172 = scalar_lea.vmem [#allocation4], %s171
        %s173 = smul.u32 32, %s25
        %p174 = scmp.lt.s32.totalorder %s24, 1
        %s175 = scalar_select %p174, %s24, 1
        %p176 = scmp.lt.s32.totalorder %s173, 31
        %s177 = scalar_select %p176, %s173, 31
        %s178 = smul.addr %s175, 32
        %s179 = sadd.s32 %s177, %s178
        %s180 = smul.addr %s179, 8
        %s181 = scalar_lea.vmem %s0, %s180
        %s182 = smul.u32 32, %s25
        %v183 = vld [vmem:[%s181] sm:$0xff]
        %v184 = vld [vmem:[%s181 + $0x8] sm:$0xff]
        %v185 = vld [vmem:[%s181 + $0x10] sm:$0xff]
        %v186 = vld [vmem:[%s181 + $0x18] sm:$0xff]
        %v187 = vld [vmem:[%s181 + $0x20] sm:$0xff]
        %v188 = vld [vmem:[%s181 + $0x28] sm:$0xff]
        %v189 = vld [vmem:[%s181 + $0x30] sm:$0xff]
        %v190 = vld [vmem:[%s181 + $0x38] sm:$0xff]
        %v191 = vld [vmem:[%s181 + $0x40] sm:$0xff]
        %v192 = vld [vmem:[%s181 + $0x48] sm:$0xff]
        %v193 = vld [vmem:[%s181 + $0x50] sm:$0xff]
        %v194 = vld [vmem:[%s181 + $0x58] sm:$0xff]
        %v195 = vld [vmem:[%s181 + $0x60] sm:$0xff]
        %v196 = vld [vmem:[%s181 + $0x68] sm:$0xff]
        %v197 = vld [vmem:[%s181 + $0x70] sm:$0xff]
        %v198 = vld [vmem:[%s181 + $0x78] sm:$0xff]
        %v199 = vld [vmem:[%s181 + $0x80] sm:$0xff]
        %v200 = vld [vmem:[%s181 + $0x88] sm:$0xff]
        %v201 = vld [vmem:[%s181 + $0x90] sm:$0xff]
        %v202 = vld [vmem:[%s181 + $0x98] sm:$0xff]
        %v203 = vld [vmem:[%s181 + $0xa0] sm:$0xff]
        %v204 = vld [vmem:[%s181 + $0xa8] sm:$0xff]
        %v205 = vld [vmem:[%s181 + $0xb0] sm:$0xff]
        %v206 = vld [vmem:[%s181 + $0xb8] sm:$0xff]
        %v207 = vld [vmem:[%s181 + $0xc0] sm:$0xff]
        %v208 = vld [vmem:[%s181 + $0xc8] sm:$0xff]
        %v209 = vld [vmem:[%s181 + $0xd0] sm:$0xff]
        %v210 = vld [vmem:[%s181 + $0xd8] sm:$0xff]
        %v211 = vld [vmem:[%s181 + $0xe0] sm:$0xff]
        %v212 = vld [vmem:[%s181 + $0xe8] sm:$0xff]
        %v213 = vld [vmem:[%s181 + $0xf0] sm:$0xff]
        %v214 = vld [vmem:[%s181 + $0xf8] sm:$0xff]
        %vm215 = vcmask 31744
        %v216 = vsel %vm215, %v183, 0.0
        %v217 = vsel %vm215, %v184, 0.0
        %v218 = vadd.f32 %v216, %v217
        %v219 = vsel %vm215, %v185, 0.0
        %v220 = vadd.f32 %v218, %v219
        %v221 = vsel %vm215, %v186, 0.0
        %v222 = vadd.f32 %v220, %v221
        %v223 = vsel %vm215, %v187, 0.0
        %v224 = vadd.f32 %v222, %v223
        %v225 = vsel %vm215, %v188, 0.0
        %v226 = vadd.f32 %v224, %v225
        %v227 = vsel %vm215, %v189, 0.0
        %v228 = vadd.f32 %v226, %v227
        %v229 = vsel %vm215, %v190, 0.0
        %v230 = vadd.f32 %v228, %v229
        %v231 = vsel %vm215, %v191, 0.0
        %v232 = vadd.f32 %v230, %v231
        %v233 = vsel %vm215, %v192, 0.0
        %v234 = vadd.f32 %v232, %v233
        %v235 = vsel %vm215, %v193, 0.0
        %v236 = vadd.f32 %v234, %v235
        %v237 = vsel %vm215, %v194, 0.0
        %v238 = vadd.f32 %v236, %v237
        %v239 = vsel %vm215, %v195, 0.0
        %v240 = vadd.f32 %v238, %v239
        %v241 = vsel %vm215, %v196, 0.0
        %v242 = vadd.f32 %v240, %v241
        %v243 = vsel %vm215, %v197, 0.0
        %v244 = vadd.f32 %v242, %v243
        %v245 = vsel %vm215, %v198, 0.0
        %v246 = vadd.f32 %v244, %v245
        %v247 = vsel %vm215, %v199, 0.0
        %v248 = vadd.f32 %v246, %v247
        %v249 = vsel %vm215, %v200, 0.0
        %v250 = vadd.f32 %v248, %v249
        %v251 = vsel %vm215, %v201, 0.0
        %v252 = vadd.f32 %v250, %v251
        %v253 = vsel %vm215, %v202, 0.0
        %v254 = vadd.f32 %v252, %v253
        %v255 = vsel %vm215, %v203, 0.0
        %v256 = vadd.f32 %v254, %v255
        %v257 = vsel %vm215, %v204, 0.0
        %v258 = vadd.f32 %v256, %v257
        %v259 = vsel %vm215, %v205, 0.0
        %v260 = vadd.f32 %v258, %v259
        %v261 = vsel %vm215, %v206, 0.0
        %v262 = vadd.f32 %v260, %v261
        %v263 = vsel %vm215, %v207, 0.0
        %v264 = vadd.f32 %v262, %v263
        %v265 = vsel %vm215, %v208, 0.0
        %v266 = vadd.f32 %v264, %v265
        %v267 = vsel %vm215, %v209, 0.0
        %v268 = vadd.f32 %v266, %v267
        %v269 = vsel %vm215, %v210, 0.0
        %v270 = vadd.f32 %v268, %v269
        %v271 = vsel %vm215, %v211, 0.0
        %v272 = vadd.f32 %v270, %v271
        %v273 = vsel %vm215, %v212, 0.0
        %v274 = vadd.f32 %v272, %v273
        %v275 = vsel %vm215, %v213, 0.0
        %v276 = vadd.f32 %v274, %v275
        %v277 = vsel %vm215, %v214, 0.0
        %v278 = vadd.f32 %v276, %v277
        %v279 = vrot.slane %v278, 4
        %v280 = vadd.f32 %v278, %v279
        %v281 = vrot.slane %v280, 2
        %v282 = vadd.f32 %v280, %v281
        %v283 = vrot.slane %v282, 1
        %v284 = vadd.f32 %v282, %v283
        %vm285 = vcmask 24576
        %286 = vst.msk [vmem:[%s166] sm:$0x1] %vm285, %v284
        %v287 = vmul.f32 %v183, %v183
        %v288 = vmul.f32 %v184, %v184
        %v289 = vmul.f32 %v185, %v185
        %v290 = vmul.f32 %v186, %v186
        %v291 = vmul.f32 %v187, %v187
        %v292 = vmul.f32 %v188, %v188
        %v293 = vmul.f32 %v189, %v189
        %v294 = vmul.f32 %v190, %v190
        %v295 = vmul.f32 %v191, %v191
        %v296 = vmul.f32 %v192, %v192
        %v297 = vmul.f32 %v193, %v193
        %v298 = vmul.f32 %v194, %v194
        %v299 = vmul.f32 %v195, %v195
        %v300 = vmul.f32 %v196, %v196
        %v301 = vmul.f32 %v197, %v197
        %v302 = vmul.f32 %v198, %v198
        %v303 = vmul.f32 %v199, %v199
        %v304 = vmul.f32 %v200, %v200
        %v305 = vmul.f32 %v201, %v201
        %v306 = vmul.f32 %v202, %v202
        %v307 = vmul.f32 %v203, %v203
        %v308 = vmul.f32 %v204, %v204
        %v309 = vmul.f32 %v205, %v205
        %v310 = vmul.f32 %v206, %v206
        %v311 = vmul.f32 %v207, %v207
        %v312 = vmul.f32 %v208, %v208
        %v313 = vmul.f32 %v209, %v209
        %v314 = vmul.f32 %v210, %v210
        %v315 = vmul.f32 %v211, %v211
        %v316 = vmul.f32 %v212, %v212
        %v317 = vmul.f32 %v213, %v213
        %v318 = vmul.f32 %v214, %v214
        %v319 = vsel %vm215, %v287, 0.0
        %v320 = vsel %vm215, %v288, 0.0
        %v321 = vadd.f32 %v319, %v320
        %v322 = vsel %vm215, %v289, 0.0
        %v323 = vadd.f32 %v321, %v322
        %v324 = vsel %vm215, %v290, 0.0
        %v325 = vadd.f32 %v323, %v324
        %v326 = vsel %vm215, %v291, 0.0
        %v327 = vadd.f32 %v325, %v326
        %v328 = vsel %vm215, %v292, 0.0
        %v329 = vadd.f32 %v327, %v328
        %v330 = vsel %vm215, %v293, 0.0
        %v331 = vadd.f32 %v329, %v330
        %v332 = vsel %vm215, %v294, 0.0
        %v333 = vadd.f32 %v331, %v332
        %v334 = vsel %vm215, %v295, 0.0
        %v335 = vadd.f32 %v333, %v334
        %v336 = vsel %vm215, %v296, 0.0
        %v337 = vadd.f32 %v335, %v336
        %v338 = vsel %vm215, %v297, 0.0
        %v339 = vadd.f32 %v337, %v338
        %v340 = vsel %vm215, %v298, 0.0
        %v341 = vadd.f32 %v339, %v340
        %v342 = vsel %vm215, %v299, 0.0
        %v343 = vadd.f32 %v341, %v342
        %v344 = vsel %vm215, %v300, 0.0
        %v345 = vadd.f32 %v343, %v344
        %v346 = vsel %vm215, %v301, 0.0
        %v347 = vadd.f32 %v345, %v346
        %v348 = vsel %vm215, %v302, 0.0
        %v349 = vadd.f32 %v347, %v348
        %v350 = vsel %vm215, %v303, 0.0
        %v351 = vadd.f32 %v349, %v350
        %v352 = vsel %vm215, %v304, 0.0
        %v353 = vadd.f32 %v351, %v352
        %v354 = vsel %vm215, %v305, 0.0
        %v355 = vadd.f32 %v353, %v354
        %v356 = vsel %vm215, %v306, 0.0
        %v357 = vadd.f32 %v355, %v356
        %v358 = vsel %vm215, %v307, 0.0
        %v359 = vadd.f32 %v357, %v358
        %v360 = vsel %vm215, %v308, 0.0
        %v361 = vadd.f32 %v359, %v360
        %v362 = vsel %vm215, %v309, 0.0
        %v363 = vadd.f32 %v361, %v362
        %v364 = vsel %vm215, %v310, 0.0
        %v365 = vadd.f32 %v363, %v364
        %v366 = vsel %vm215, %v311, 0.0
        %v367 = vadd.f32 %v365, %v366
        %v368 = vsel %vm215, %v312, 0.0
        %v369 = vadd.f32 %v367, %v368
        %v370 = vsel %vm215, %v313, 0.0
        %v371 = vadd.f32 %v369, %v370
        %v372 = vsel %vm215, %v314, 0.0
        %v373 = vadd.f32 %v371, %v372
        %v374 = vsel %vm215, %v315, 0.0
        %v375 = vadd.f32 %v373, %v374
        %v376 = vsel %vm215, %v316, 0.0
        %v377 = vadd.f32 %v375, %v376
        %v378 = vsel %vm215, %v317, 0.0
        %v379 = vadd.f32 %v377, %v378
        %v380 = vsel %vm215, %v318, 0.0
        %v381 = vadd.f32 %v379, %v380
        %v382 = vrot.slane %v381, 4
        %v383 = vadd.f32 %v381, %v382
        %v384 = vrot.slane %v383, 2
        %v385 = vadd.f32 %v383, %v384
        %v386 = vrot.slane %v385, 1
        %v387 = vadd.f32 %v385, %v386
        %388 = vst.msk [vmem:[%s172] sm:$0x1] %vm285, %v387
        %s389 = sand.u32 %s70, 1
        %s390 = scalar_lea.sflag [#allocation3], %s389
        %s391 = sand.u32 %s70, 1
        %s392 = scalar_lea.vmem [#allocation2], %s391
        %s393 = sand.u32 %s98, 1
        %s394 = scalar_lea.sflag [#allocation5], %s393
        %s395 = sand.u32 %s98, 1
        %s396 = scalar_lea.vmem [#allocation4], %s395
        // Predicated region
        $region25: #{tpu_custom_call.1} parent=23 // pred_check
          %p397 = pneg %p80
        $region26: #{tpu_custom_call.1} parent=23 // pred_check_branch
          %399 = sbr.rel (%p397) target = $region28
        $region27: #{tpu_custom_call.1} parent=23 // pred_region
          %s401 = ssub.s32 16, 16
          %402 = vsyncadd %s390, %s401
          %s403 = sadd.s32 %s25, %s24
          %s404 = smul.addr %s403, 16
          %s405 = scalar_lea.hbm %s1, %s404
          %s407 = sshll.u32 %s392, 4
          %s408 = int_to_ptr.vmem [resolvable:$true] %s407
          %410 = dma.vmem_to_hbm [thread:$0]  %s408, 16, %s405, %s390
        $region28: #{tpu_custom_call.1} parent=23 // pred_fallthru
          _
        // Predicated region
        $region29: #{tpu_custom_call.1} parent=23 // pred_check
          %p411 = pneg %p108
        $region30: #{tpu_custom_call.1} parent=23 // pred_check_branch
          %413 = sbr.rel (%p411) target = $region32
        $region31: #{tpu_custom_call.1} parent=23 // pred_region
          %s415 = ssub.s32 16, 16
          %416 = vsyncadd %s394, %s415
          %s417 = sadd.s32 %s25, %s24
          %s418 = smul.addr %s417, 16
          %s419 = scalar_lea.hbm %s2, %s418
          %s421 = sshll.u32 %s396, 4
          %s422 = int_to_ptr.vmem [resolvable:$true] %s421
          %424 = dma.vmem_to_hbm [thread:$0]  %s422, 16, %s419, %s394
        $region32: #{tpu_custom_call.1} parent=23 // pred_fallthru
          _
      $region24: #{tpu_custom_call.1} parent=5 // pred_fallthru
        _
      %p425 = scmp.le.s32.totalorder 2, %s15
      // Predicated region
      $region33: #{tpu_custom_call.1} parent=5 // pred_check
        %p426 = pneg %p425
      $region34: #{tpu_custom_call.1} parent=5 // pred_check_branch
        %428 = sbr.rel (%p426) target = $region36
      $region35: #{tpu_custom_call.1} parent=5 // pred_region
        %s429 = ssub.s32 %s15, 2
        // Predicated region
        $region37: #{tpu_custom_call.1} parent=35 // pred_check
          %p430 = pneg %p86
        $region38: #{tpu_custom_call.1} parent=35 // pred_check_branch
          %432 = sbr.rel (%p430) target = $region40
        $region39: #{tpu_custom_call.1} parent=35 // pred_region
          %s433 = sand.u32 %s71, 1
          %s434 = scalar_lea.sflag [#allocation3], %s433
          %s435 = sand.u32 %s71, 1
          %s436 = scalar_lea.vmem [#allocation2], %s435
          %437 = dma.done %s434, 16
        $region40: #{tpu_custom_call.1} parent=35 // pred_fallthru
          _
        // Predicated region
        $region41: #{tpu_custom_call.1} parent=35 // pred_check
          %p438 = pneg %p114
        $region42: #{tpu_custom_call.1} parent=35 // pred_check_branch
          %440 = sbr.rel (%p438) target = $region44
        $region43: #{tpu_custom_call.1} parent=35 // pred_region
          %s441 = sand.u32 %s99, 1
          %s442 = scalar_lea.sflag [#allocation5], %s441
          %s443 = sand.u32 %s99, 1
          %s444 = scalar_lea.vmem [#allocation4], %s443
          %445 = dma.done %s442, 16
        $region44: #{tpu_custom_call.1} parent=35 // pred_fallthru
          _
      $region36: #{tpu_custom_call.1} parent=5 // pred_fallthru
        _
    $region6: #{tpu_custom_call.1} parent=1 // loop_footer
      %s19 = sadd.s32 1, %s15
    $region7: #{tpu_custom_call.1} parent=1 // loop_footer_branch
      %14 = sbr.rel target = $region3
    $region8: #{tpu_custom_call.1} parent=1 // loop_exit
      _
    %446 = vsyncpa [#allocation3], 1
    %s447 = scalar_lea.sflag [#allocation3], 1
    %448 = vsyncpa %s447, 1
    %449 = vsyncpa [#allocation5], 1
    %s450 = scalar_lea.sflag [#allocation5], 1
    %451 = vsyncpa %s450, 1

</llo_original>
